<compile_context>
chip_gen: v7x
topology: tpu7x:2x2x1
jax: 0.10.0
libtpu: 0.0.40
codegen_flags: <defaults>
</compile_context>

<pallas_src>
import jax
import jax.numpy as jnp
from jax.experimental import pallas as pl
from jax.experimental.pallas import tpu as pltpu


def _resblock_kernel(x_ref, w1_ref, b1_ref, w2_ref, b2_ref, o_ref):
    # x_ref: (TB, F)   w1_ref/w2_ref: (F, F) (f32 or bf16)   b*_ref: (1, F) f32
    x = x_ref[...]
    x_f32 = x.astype(jnp.float32)

    # First matmul: feed the MXU in the weight dtype, accumulate in f32.
    h = jnp.dot(x.astype(w1_ref.dtype), w1_ref[...],
                preferred_element_type=jnp.float32) + b1_ref[...]
    # Second matmul: LHS cast is a no-op in the f32 path (keeps full f32 precision);
    # only in the bf16-weight path does it drop to bf16 for the MXU feed.
    h = jnp.dot(h.astype(w2_ref.dtype), w2_ref[...],
                preferred_element_type=jnp.float32) + b2_ref[...]

    out = h + x_f32                                             # residual add (f32)
    o_ref[...] = jnp.maximum(out, 0.0).astype(o_ref.dtype)      # ReLU


def residual_block(x, w1, b1, w2, b2, *, tile_b=256, weight_dtype=None):
    """Fused y = relu(fc2(fc1(x)) + x).

    x: (B, F); w1, w2: (out, in) PyTorch-style; b1, b2: (out,).
    weight_dtype: optionally cast weights to e.g. jnp.bfloat16 for the MXU
    (accumulation, residual add and ReLU stay in f32).
    """
    B, F = x.shape
    assert w1.shape == (F, F) and w2.shape == (F, F), "residual add needs in==out"
    # TODO(synk): for very large F (2*F*F*itemsize approaching v7x's 64 MiB VMEM),
    # tile the K dimension of the second matmul (extra grid axis / emit_pipeline)
    # instead of keeping both weights fully resident.

    w_dt = jnp.dtype(weight_dtype) if weight_dtype is not None else w1.dtype
    w1_t = w1.T.astype(w_dt)                     # (in, out) so the kernel does x @ W
    w2_t = w2.T.astype(w_dt)
    b1_r = b1.reshape(1, F).astype(jnp.float32)
    b2_r = b2.reshape(1, F).astype(jnp.float32)

    # Batch tile: MXU-sized, multiple of the sublane packing granularity, padded tail.
    sub = 16 if x.dtype == jnp.bfloat16 else 8
    tb = min(int(tile_b), B)
    tb = max(sub, ((tb + sub - 1) // sub) * sub)
    b_pad = pl.cdiv(B, tb) * tb
    x_in = x if b_pad == B else jnp.pad(x, ((0, b_pad - B), (0, 0)))
    grid = (b_pad // tb,)

    # Explicit scoped-VMEM budget: resident weights (double-buffer worst case) +
    # double-buffered x/out tiles + biases, 30% headroom, clamped to v7x's 64 MiB.
    w_item = jnp.dtype(w_dt).itemsize
    vmem_bytes = int(1.3 * (2 * 2 * F * F * w_item        # two weights x 2 buffers
                            + 2 * 2 * tb * F * 4          # x/out tiles, f32, 2 buffers
                            + 4 * F * 4))                 # biases
    vmem_bytes = min(max(vmem_bytes, 32 * 1024 * 1024), 64 * 1024 * 1024)

    cost = pl.CostEstimate(
        flops=4 * B * F * F,                               # two (B,F)x(F,F) matmuls
        transcendentals=0,
        bytes_accessed=(2 * B * F * x.dtype.itemsize       # x read + out write
                        + 2 * F * F * w_item               # two weights
                        + 2 * F * 4),                      # two biases
    )

    out = pl.pallas_call(
        _resblock_kernel,
        out_shape=jax.ShapeDtypeStruct((b_pad, F), x.dtype),
        grid_spec=pltpu.PrefetchScalarGridSpec(
            num_scalar_prefetch=0,
            grid=grid,
            in_specs=[
                pl.BlockSpec((tb, F), lambda i: (i, 0)),   # x tile
                pl.BlockSpec((F, F),  lambda i: (0, 0)),   # W1^T (resident)
                pl.BlockSpec((1, F),  lambda i: (0, 0)),   # b1
                pl.BlockSpec((F, F),  lambda i: (0, 0)),   # W2^T (resident)
                pl.BlockSpec((1, F),  lambda i: (0, 0)),   # b2
            ],
            out_specs=pl.BlockSpec((tb, F), lambda i: (i, 0)),
        ),
        compiler_params=pltpu.CompilerParams(
            dimension_semantics=("parallel",),
            vmem_limit_bytes=vmem_bytes,
        ),
        cost_estimate=cost,
    )(x_in, w1_t, b1_r, w2_t, b2_r)

    return out if b_pad == B else out[:B]


if __name__ == "__main__":
    B = 512            # two MXU-sized (256-row) tiles -> grid=(2,), shards over v7x's 2 TCs
    F = 128            # in_features == out_features (required by `out += residual`);
                       # multiple of 128 -> lane-dense, unmasked output stores

    key = jax.random.PRNGKey(0)
    kx, kw1, kb1, kw2, kb2 = jax.random.split(key, 5)

    x = jax.random.normal(kx, (B, F), dtype=jnp.float32)
    # Deterministic synthetic params matching nn.Linear shapes: weight (out, in), bias (out,)
    bound = 1.0 / (F ** 0.5)
    w1 = jax.random.uniform(kw1, (F, F), minval=-bound, maxval=bound, dtype=jnp.float32)
    b1 = jax.random.uniform(kb1, (F,),   minval=-bound, maxval=bound, dtype=jnp.float32)
    w2 = jax.random.uniform(kw2, (F, F), minval=-bound, maxval=bound, dtype=jnp.float32)
    b2 = jax.random.uniform(kb2, (F,),   minval=-bound, maxval=bound, dtype=jnp.float32)

    # Reference (plain JAX) matching the PyTorch forward.
    ref = jnp.maximum((x @ w1.T + b1) @ w2.T + b2 + x, 0.0)

    # Full-f32 path (matches PyTorch forward numerics).
    out = jax.block_until_ready(residual_block(x, w1, b1, w2, b2))
    assert out.shape == (B, F)
    assert jnp.allclose(out, ref, atol=1e-3, rtol=1e-3), "f32 mismatch vs reference"

    # bf16-weight path (recommended on v6e/v7x), f32 accumulate / residual / ReLU.
    out_bf16 = jax.block_until_ready(
        residual_block(x, w1, b1, w2, b2, weight_dtype=jnp.bfloat16))
    assert jnp.allclose(out_bf16, ref, atol=5e-2, rtol=5e-2), "bf16 mismatch vs reference"

    print("KERNEL_OK")
</pallas_src>

<mosaic_0001>
module attributes {stable_mosaic.version = 11 : i64} {
  func.func @_resblock_kernel(%arg0: i32, %arg1: memref<256x128xf32, #tpu.memory_space<vmem>>, %arg2: memref<128x128xf32, #tpu.memory_space<vmem>>, %arg3: memref<1x128xf32, #tpu.memory_space<vmem>>, %arg4: memref<128x128xf32, #tpu.memory_space<vmem>>, %arg5: memref<1x128xf32, #tpu.memory_space<vmem>>, %arg6: memref<256x128xf32, #tpu.memory_space<vmem>>) attributes {dimension_semantics = [#tpu.dimension_semantics<parallel>], iteration_bounds = array<i64: 2>, scalar_prefetch = 0 : i64, scratch_operands = 0 : i64, tpu.core_type = #tpu.core_type<tc>, window_params = [{transform_indices = @transform_0, window_bounds = array<i64: 256, 128>}, {pipeline_mode = #tpu.pipeline_mode<synchronous>, transform_indices = @transform_1, window_bounds = array<i64: 128, 128>}, {pipeline_mode = #tpu.pipeline_mode<synchronous>, transform_indices = @transform_2, window_bounds = array<i64: 1, 128>}, {pipeline_mode = #tpu.pipeline_mode<synchronous>, transform_indices = @transform_3, window_bounds = array<i64: 128, 128>}, {pipeline_mode = #tpu.pipeline_mode<synchronous>, transform_indices = @transform_4, window_bounds = array<i64: 1, 128>}, {transform_indices = @transform_5, window_bounds = array<i64: 256, 128>}]} {
    %c0 = arith.constant 0 : index
    %c0_0 = arith.constant 0 : index
    %0 = vector.load %arg1[%c0, %c0_0] : memref<256x128xf32, #tpu.memory_space<vmem>>, vector<256x128xf32>
    %c0_1 = arith.constant 0 : index
    %c0_2 = arith.constant 0 : index
    %1 = vector.load %arg2[%c0_1, %c0_2] : memref<128x128xf32, #tpu.memory_space<vmem>>, vector<128x128xf32>
    %cst = arith.constant dense<0.000000e+00> : vector<256x128xf32>
    %2 = tpu.matmul %0, %1, %cst {dimension_numbers = #tpu.dot_dimension_numbers<[1], [0], [0], [1], [0, 0, 1, 1], [], []>} : vector<256x128xf32>, vector<128x128xf32>, vector<256x128xf32> -> vector<256x128xf32>
    %c0_3 = arith.constant 0 : index
    %c0_4 = arith.constant 0 : index
    %3 = vector.load %arg3[%c0_3, %c0_4] : memref<1x128xf32, #tpu.memory_space<vmem>>, vector<1x128xf32>
    %4 = vector.broadcast %3 : vector<1x128xf32> to vector<256x128xf32>
    %5 = arith.addf %2, %4 : vector<256x128xf32>
    %c0_5 = arith.constant 0 : index
    %c0_6 = arith.constant 0 : index
    %6 = vector.load %arg4[%c0_5, %c0_6] : memref<128x128xf32, #tpu.memory_space<vmem>>, vector<128x128xf32>
    %cst_7 = arith.constant dense<0.000000e+00> : vector<256x128xf32>
    %7 = tpu.matmul %5, %6, %cst_7 {dimension_numbers = #tpu.dot_dimension_numbers<[1], [0], [0], [1], [0, 0, 1, 1], [], []>} : vector<256x128xf32>, vector<128x128xf32>, vector<256x128xf32> -> vector<256x128xf32>
    %c0_8 = arith.constant 0 : index
    %c0_9 = arith.constant 0 : index
    %8 = vector.load %arg5[%c0_8, %c0_9] : memref<1x128xf32, #tpu.memory_space<vmem>>, vector<1x128xf32>
    %9 = vector.broadcast %8 : vector<1x128xf32> to vector<256x128xf32>
    %10 = arith.addf %7, %9 : vector<256x128xf32>
    %11 = arith.addf %10, %0 : vector<256x128xf32>
    %cst_10 = arith.constant 0.000000e+00 : f32
    %12 = vector.broadcast %cst_10 : f32 to vector<256x128xf32>
    %13 = arith.maximumf %11, %12 : vector<256x128xf32>
    %c0_11 = arith.constant 0 : index
    %c0_12 = arith.constant 0 : index
    %14 = vector.load %arg6[%c0_11, %c0_12] : memref<256x128xf32, #tpu.memory_space<vmem>>, vector<256x128xf32>
    tpu.vector_store %arg6[%c0_11, %c0_12], %13 {strides = array<i32>} : memref<256x128xf32, #tpu.memory_space<vmem>>, vector<256x128xf32>,
    return
  }
  func.func @transform_0(%arg0: i32) -> (i32, i32) {
    %c0_i32 = arith.constant 0 : i32
    %c0_i32_0 = arith.constant 0 : i32
    return %arg0, %c0_i32 : i32, i32
  }
  func.func @transform_1(%arg0: i32) -> (i32, i32) {
    %c0_i32 = arith.constant 0 : i32
    %c0_i32_0 = arith.constant 0 : i32
    %c0_i32_1 = arith.constant 0 : i32
    return %c0_i32, %c0_i32_0 : i32, i32
  }
  func.func @transform_2(%arg0: i32) -> (i32, i32) {
    %c0_i32 = arith.constant 0 : i32
    %c0_i32_0 = arith.constant 0 : i32
    %c0_i32_1 = arith.constant 0 : i32
    return %c0_i32, %c0_i32_0 : i32, i32
  }
  func.func @transform_3(%arg0: i32) -> (i32, i32) {
    %c0_i32 = arith.constant 0 : i32
    %c0_i32_0 = arith.constant 0 : i32
    %c0_i32_1 = arith.constant 0 : i32
    return %c0_i32, %c0_i32_0 : i32, i32
  }
  func.func @transform_4(%arg0: i32) -> (i32, i32) {
    %c0_i32 = arith.constant 0 : i32
    %c0_i32_0 = arith.constant 0 : i32
    %c0_i32_1 = arith.constant 0 : i32
    return %c0_i32, %c0_i32_0 : i32, i32
  }
  func.func @transform_5(%arg0: i32) -> (i32, i32) {
    %c0_i32 = arith.constant 0 : i32
    %c0_i32_0 = arith.constant 0 : i32
    return %arg0, %c0_i32 : i32, i32
  }
}

</mosaic_0001>

<llo_original>
// kernel: tpu_custom_call.1
$region0: #{tpu_custom_call.1}
  #allocation0 [shape = 'u32[]', space=smem, size = 0x4, offset = 0x4, fixed_abs, tag = 'smem constant byte address 0x4 - core index']
  #allocation1 [shape = 'u32[144,128]{1,0:T(1,128)}', space=vmem, size = 0x12000, scoped, tag = 'internal scratch']
  %s0 = inlined_call_operand.hbm [shape: f32[512,128], index: 0, kind: input, shape index: {}]
  %s1 = inlined_call_operand.hbm [shape: f32[128,128], index: 1, kind: input, shape index: {}]
  %s2 = inlined_call_operand.vmem [shape: f32[1,128], index: 2, kind: input, shape index: {}]
  %s3 = inlined_call_operand.hbm [shape: f32[128,128], index: 3, kind: input, shape index: {}]
  %s4 = inlined_call_operand.vmem [shape: f32[1,128], index: 4, kind: input, shape index: {}]
  %s5 = inlined_call_operand.hbm [shape: f32[512,128], index: 5, kind: output, shape index: {}]
  %s6 = sld [smem:[#allocation0]]
  $region65: #{tpu_custom_call.1} parent=0
    _
  %s8 = ssub.s32 1, %s6
  %s9 = scalar_select 0, %s8, %s6
  $region1: #{tpu_custom_call.1} parent=0
    #allocation2 [shape = 'u8[262144]{0}', space=vmem, size = 0x40000, scoped, tag = 'input window, operand 0']
    #allocation3 [shape = 's32[2]{0}', space=sflag, size = 0x8, scoped, tag = 'scoped memory for tpu_custom_call.1']
    #allocation4 [shape = 's32[2]{0}', space=sflag, size = 0x8, scoped, tag = 'scoped memory for tpu_custom_call.1']
    #allocation5 [shape = 'u8[65536]{0}', space=vmem, size = 0x10000, scoped, tag = 'input window, operand 1, single buffered']
    #allocation6 [shape = 's32[1]{0}', space=sflag, size = 0x4, scoped, tag = 'scoped memory for tpu_custom_call.1']
    #allocation7 [shape = 'u8[65536]{0}', space=vmem, size = 0x10000, scoped, tag = 'input window, operand 3, single buffered']
    #allocation8 [shape = 'u8[262144]{0}', space=vmem, size = 0x40000, scoped, tag = 'output window, operand 0']
    %10 = vsyncpa [#allocation3], 0
    %s11 = scalar_lea.sflag [#allocation3], 1
    %12 = vsyncpa %s11, 0
    %13 = vsyncpa [#allocation6], 0
    %14 = vsyncpa [#allocation4], 0
    %s15 = scalar_lea.sflag [#allocation4], 1
    %16 = vsyncpa %s15, 0
    loop: start=0, step=1, limit=4
    $region2: #{tpu_custom_call.1} parent=1 // loop_pre_header
      _
    $region3: #{tpu_custom_call.1} parent=1 // loop_header
      %s18 = sphi 0, %s22
      %p19 = scmp.ge.s32.totalorder %s18, 4
      %s28 = sphi 0, %s30
      %s31 = sphi 0, %s28
      %s32 = sphi 0, %s31
      %s48 = sphi 0, %s32
      %s52 = sphi 0, %s52
      %s54 = sphi 0, %s52
      %s55 = sphi 0, %s54
      %s69 = sphi 0, %s55
      %s73 = sphi 0, %s73
      %s75 = sphi 0, %s73
      %s76 = sphi 0, %s75
      %s90 = sphi 0, %s76
      %s94 = sphi 0, %s94
      %s96 = sphi 0, %s94
      %s97 = sphi 0, %s96
      %s111 = sphi 0, %s97
      %s115 = sphi 0, %s115
      %s117 = sphi 0, %s115
      %s118 = sphi 0, %s117
      %s132 = sphi 0, %s118
      %s138 = sphi 0, %s140
      %s141 = sphi 0, %s138
      %s142 = sphi 0, %s141
      %s158 = sphi 0, %s142
    $region4: #{tpu_custom_call.1} parent=1 // loop_header_branch
      %21 = sbr.rel (%p19) target = $region8
    $region5: #{tpu_custom_call.1} parent=1 // loop_body
      %s23 = ssub.s32 %s18, 1
      %s24 = ssub.s32 %s18, 2
      %s25 = sadd.s32 %s18, 1
      %s26 = ssub.s32 %s18, %s25
      %p27 = scmp.eq.s32.totalorder %s26, 0
      %s29 = sadd.s32 %s28, 1
      %s30 = scalar_select %p27, %s28, %s29
      %p33 = pneg %p27
      %p34 = scmp.eq.s32.totalorder %s18, 1
      %p35 = por %p33, %p34
      %p36 = scmp.ne.s32.totalorder %s28, %s31
      %p37 = scmp.eq.s32.totalorder %s18, 0
      %p38 = por %p36, %p37
      %p39 = scmp.ne.s32.totalorder %s28, %s31
      %p40 = scmp.eq.s32.totalorder %s23, 1
      %p41 = por %p39, %p40
      %p42 = scmp.ne.s32.totalorder %s31, %s32
      %p43 = scmp.eq.s32.totalorder %s23, 0
      %p44 = por %p42, %p43
      %p45 = scmp.ne.s32.totalorder %s31, %s32
      %p46 = scmp.eq.s32.totalorder %s24, 1
      %p47 = por %p45, %p46
      %p49 = scmp.ne.s32.totalorder %s32, %s48
      %p50 = scmp.eq.s32.totalorder %s24, 0
      %p51 = por %p49, %p50
      %s53 = sadd.s32 %s52, 1
      %p56 = scmp.eq.s32.totalorder %s18, 1
      %p57 = scmp.ne.s32.totalorder %s52, %s54
      %p58 = scmp.eq.s32.totalorder %s18, 0
      %p59 = por %p57, %p58
      %p60 = scmp.ne.s32.totalorder %s52, %s54
      %p61 = scmp.eq.s32.totalorder %s23, 1
      %p62 = por %p60, %p61
      %p63 = scmp.ne.s32.totalorder %s54, %s55
      %p64 = scmp.eq.s32.totalorder %s23, 0
      %p65 = por %p63, %p64
      %p66 = scmp.ne.s32.totalorder %s54, %s55
      %p67 = scmp.eq.s32.totalorder %s24, 1
      %p68 = por %p66, %p67
      %p70 = scmp.ne.s32.totalorder %s55, %s69
      %p71 = scmp.eq.s32.totalorder %s24, 0
      %p72 = por %p70, %p71
      %s74 = sadd.s32 %s73, 1
      %p77 = scmp.eq.s32.totalorder %s18, 1
      %p78 = scmp.ne.s32.totalorder %s73, %s75
      %p79 = scmp.eq.s32.totalorder %s18, 0
      %p80 = por %p78, %p79
      %p81 = scmp.ne.s32.totalorder %s73, %s75
      %p82 = scmp.eq.s32.totalorder %s23, 1
      %p83 = por %p81, %p82
      %p84 = scmp.ne.s32.totalorder %s75, %s76
      %p85 = scmp.eq.s32.totalorder %s23, 0
      %p86 = por %p84, %p85
      %p87 = scmp.ne.s32.totalorder %s75, %s76
      %p88 = scmp.eq.s32.totalorder %s24, 1
      %p89 = por %p87, %p88
      %p91 = scmp.ne.s32.totalorder %s76, %s90
      %p92 = scmp.eq.s32.totalorder %s24, 0
      %p93 = por %p91, %p92
      %s95 = sadd.s32 %s94, 1
      %p98 = scmp.eq.s32.totalorder %s18, 1
      %p99 = scmp.ne.s32.totalorder %s94, %s96
      %p100 = scmp.eq.s32.totalorder %s18, 0
      %p101 = por %p99, %p100
      %p102 = scmp.ne.s32.totalorder %s94, %s96
      %p103 = scmp.eq.s32.totalorder %s23, 1
      %p104 = por %p102, %p103
      %p105 = scmp.ne.s32.totalorder %s96, %s97
      %p106 = scmp.eq.s32.totalorder %s23, 0
      %p107 = por %p105, %p106
      %p108 = scmp.ne.s32.totalorder %s96, %s97
      %p109 = scmp.eq.s32.totalorder %s24, 1
      %p110 = por %p108, %p109
      %p112 = scmp.ne.s32.totalorder %s97, %s111
      %p113 = scmp.eq.s32.totalorder %s24, 0
      %p114 = por %p112, %p113
      %s116 = sadd.s32 %s115, 1
      %p119 = scmp.eq.s32.totalorder %s18, 1
      %p120 = scmp.ne.s32.totalorder %s115, %s117
      %p121 = scmp.eq.s32.totalorder %s18, 0
      %p122 = por %p120, %p121
      %p123 = scmp.ne.s32.totalorder %s115, %s117
      %p124 = scmp.eq.s32.totalorder %s23, 1
      %p125 = por %p123, %p124
      %p126 = scmp.ne.s32.totalorder %s117, %s118
      %p127 = scmp.eq.s32.totalorder %s23, 0
      %p128 = por %p126, %p127
      %p129 = scmp.ne.s32.totalorder %s117, %s118
      %p130 = scmp.eq.s32.totalorder %s24, 1
      %p131 = por %p129, %p130
      %p133 = scmp.ne.s32.totalorder %s118, %s132
      %p134 = scmp.eq.s32.totalorder %s24, 0
      %p135 = por %p133, %p134
      %s136 = ssub.s32 %s18, %s25
      %p137 = scmp.eq.s32.totalorder %s136, 0
      %s139 = sadd.s32 %s138, 1
      %s140 = scalar_select %p137, %s138, %s139
      %p143 = pneg %p137
      %p144 = scmp.eq.s32.totalorder %s18, 1
      %p145 = por %p143, %p144
      %p146 = scmp.ne.s32.totalorder %s138, %s141
      %p147 = scmp.eq.s32.totalorder %s18, 0
      %p148 = por %p146, %p147
      %p149 = scmp.ne.s32.totalorder %s138, %s141
      %p150 = scmp.eq.s32.totalorder %s23, 1
      %p151 = por %p149, %p150
      %p152 = scmp.ne.s32.totalorder %s141, %s142
      %p153 = scmp.eq.s32.totalorder %s23, 0
      %p154 = por %p152, %p153
      %p155 = scmp.ne.s32.totalorder %s141, %s142
      %p156 = scmp.eq.s32.totalorder %s24, 1
      %p157 = por %p155, %p156
      %p159 = scmp.ne.s32.totalorder %s142, %s158
      %p160 = scmp.eq.s32.totalorder %s24, 0
      %p161 = por %p159, %p160
      %p162 = scmp.le.s32.totalorder 1, %s18
      %p163 = scmp.lt.s32.totalorder %s18, 3
      %p164 = pnand %p162, %p163
      %p165 = pneg %p164
      // Predicated region
      $region9: #{tpu_custom_call.1} parent=5 // pred_check
        _
      $region10: #{tpu_custom_call.1} parent=5 // pred_check_branch
        %167 = sbr.rel (%p164) target = $region12
      $region11: #{tpu_custom_call.1} parent=5 // pred_region
        %s168 = ssub.s32 %s18, 1
        // Predicated region
        $region13: #{tpu_custom_call.1} parent=11 // pred_check
          %p169 = pneg %p65
        $region14: #{tpu_custom_call.1} parent=11 // pred_check_branch
          %171 = sbr.rel (%p169) target = $region16
        $region15: #{tpu_custom_call.1} parent=11 // pred_region
          %s173 = ssub.s32 2048, 2048
          %174 = vsyncadd [#allocation6], %s173
          %s175 = sshll.u32 [#allocation5], 4
          %s176 = int_to_ptr.vmem [resolvable:$true] %s175
          %181 = dma.hbm_to_vmem [thread:$0]  %s1, 2048, %s176, [#allocation6], 128, 128, 8
        $region16: #{tpu_custom_call.1} parent=11 // pred_fallthru
          _
        // Predicated region
        $region17: #{tpu_custom_call.1} parent=11 // pred_check
          %p182 = pneg %p86
        $region18: #{tpu_custom_call.1} parent=11 // pred_check_branch
          %184 = sbr.rel (%p182) target = $region20
        $region19: #{tpu_custom_call.1} parent=11 // pred_region
          _
        $region20: #{tpu_custom_call.1} parent=11 // pred_fallthru
          _
        // Predicated region
        $region21: #{tpu_custom_call.1} parent=11 // pred_check
          %p185 = pneg %p107
        $region22: #{tpu_custom_call.1} parent=11 // pred_check_branch
          %187 = sbr.rel (%p185) target = $region24
        $region23: #{tpu_custom_call.1} parent=11 // pred_region
          %s189 = ssub.s32 2048, 2048
          %190 = vsyncadd [#allocation6], %s189
          %s191 = sshll.u32 [#allocation7], 4
          %s192 = int_to_ptr.vmem [resolvable:$true] %s191
          %197 = dma.hbm_to_vmem [thread:$0]  %s3, 2048, %s192, [#allocation6], 128, 128, 8
        $region24: #{tpu_custom_call.1} parent=11 // pred_fallthru
          _
        // Predicated region
        $region25: #{tpu_custom_call.1} parent=11 // pred_check
          %p198 = pneg %p128
        $region26: #{tpu_custom_call.1} parent=11 // pred_check_branch
          %200 = sbr.rel (%p198) target = $region28
        $region27: #{tpu_custom_call.1} parent=11 // pred_region
          _
        $region28: #{tpu_custom_call.1} parent=11 // pred_fallthru
          _
      $region12: #{tpu_custom_call.1} parent=5 // pred_fallthru
        _
      %p201 = scmp.lt.s32.totalorder %s18, 2
      // Predicated region
      $region29: #{tpu_custom_call.1} parent=5 // pred_check
        %p202 = pneg %p201
      $region30: #{tpu_custom_call.1} parent=5 // pred_check_branch
        %204 = sbr.rel (%p202) target = $region32
      $region31: #{tpu_custom_call.1} parent=5 // pred_region
        // Predicated region
        $region33: #{tpu_custom_call.1} parent=31 // pred_check
          %p205 = pneg %p38
        $region34: #{tpu_custom_call.1} parent=31 // pred_check_branch
          %207 = sbr.rel (%p205) target = $region36
        $region35: #{tpu_custom_call.1} parent=31 // pred_region
          %s208 = sand.u32 %s28, 1
          %s209 = scalar_lea.sflag [#allocation3], %s208
          %s210 = sand.u32 %s28, 1
          %s211 = smul.addr %s210, 256
          %s212 = scalar_lea.vmem [#allocation2], %s211
          %s213 = smul.u32 32, %s18
          %s215 = ssub.s32 4096, 4096
          %216 = vsyncadd %s209, %s215
          %s217 = smul.addr %s213, 128
          %s218 = scalar_lea.hbm %s0, %s217
          %s219 = sshll.u32 %s212, 4
          %s220 = int_to_ptr.vmem [resolvable:$true] %s219
          %225 = dma.hbm_to_vmem [thread:$0]  %s218, 4096, %s220, %s209, 128, 128, 8
        $region36: #{tpu_custom_call.1} parent=31 // pred_fallthru
          _
      $region32: #{tpu_custom_call.1} parent=5 // pred_fallthru
        _
      %p226 = scmp.le.s32.totalorder 1, %s18
      %p227 = scmp.lt.s32.totalorder %s18, 3
      %p228 = pnand %p226, %p227
      %p229 = pneg %p228
      // Predicated region
      $region37: #{tpu_custom_call.1} parent=5 // pred_check
        _
      $region38: #{tpu_custom_call.1} parent=5 // pred_check_branch
        %231 = sbr.rel (%p228) target = $region40
      $region39: #{tpu_custom_call.1} parent=5 // pred_region
        %s232 = ssub.s32 %s18, 1
        %s233 = sand.u32 %s31, 1
        %s234 = scalar_lea.sflag [#allocation3], %s233
        %s235 = sand.u32 %s31, 1
        %s236 = smul.addr %s235, 256
        %s237 = scalar_lea.vmem [#allocation2], %s236
        // Predicated region
        $region41: #{tpu_custom_call.1} parent=39 // pred_check
          %p238 = pneg %p44
        $region42: #{tpu_custom_call.1} parent=39 // pred_check_branch
          %240 = sbr.rel (%p238) target = $region44
        $region43: #{tpu_custom_call.1} parent=39 // pred_region
          %241 = dma.done %s234, 4096
        $region44: #{tpu_custom_call.1} parent=39 // pred_fallthru
          _
        // Predicated region
        $region45: #{tpu_custom_call.1} parent=39 // pred_check
          %p242 = pneg %p65
        $region46: #{tpu_custom_call.1} parent=39 // pred_check_branch
          %244 = sbr.rel (%p242) target = $region48
        $region47: #{tpu_custom_call.1} parent=39 // pred_region
          %245 = dma.done [#allocation6], 2048
        $region48: #{tpu_custom_call.1} parent=39 // pred_fallthru
          _
        // Predicated region
        $region49: #{tpu_custom_call.1} parent=39 // pred_check
          %p246 = pneg %p107
        $region50: #{tpu_custom_call.1} parent=39 // pred_check_branch
          %248 = sbr.rel (%p246) target = $region52
        $region51: #{tpu_custom_call.1} parent=39 // pred_region
          %249 = dma.done [#allocation6], 2048
        $region52: #{tpu_custom_call.1} parent=39 // pred_fallthru
          _
        %s250 = sand.u32 %s31, 1
        %s251 = scalar_lea.sflag [#allocation3], %s250
        %s252 = sand.u32 %s31, 1
        %s253 = smul.addr %s252, 256
        %s254 = scalar_lea.vmem [#allocation2], %s253
        %p255 = pneg %p44
        %p256 = pneg %p41
        %p257 = pneg %p65
        %p258 = pneg %p62
        %p259 = pneg %p86
        %p260 = pneg %p83
        %p261 = pneg %p107
        %p262 = pneg %p104
        %p263 = pneg %p128
        %p264 = pneg %p125
        %p265 = pneg %p154
        %p266 = pneg %p151
        %s267 = sand.u32 %s141, 1
        %s268 = scalar_lea.sflag [#allocation4], %s267
        %s269 = sand.u32 %s141, 1
        %s270 = smul.addr %s269, 256
        %s271 = scalar_lea.vmem [#allocation8], %s270
        %s272 = smul.u32 32, %s23
        %s273 = smul.u32 32, %s23
        %v274 = vld [vmem:[%s237] sm:$0xff]
        %v275 = vld [vmem:[%s237 + $0x8] sm:$0xff]
        %v276 = vld [vmem:[%s237 + $0x10] sm:$0xff]
        %v277 = vld [vmem:[%s237 + $0x18] sm:$0xff]
        %v278 = vld [vmem:[%s237 + $0x20] sm:$0xff]
        %v279 = vld [vmem:[%s237 + $0x28] sm:$0xff]
        %v280 = vld [vmem:[%s237 + $0x30] sm:$0xff]
        %v281 = vld [vmem:[%s237 + $0x38] sm:$0xff]
        %v282 = vld [vmem:[%s237 + $0x40] sm:$0xff]
        %v283 = vld [vmem:[%s237 + $0x48] sm:$0xff]
        %v284 = vld [vmem:[%s237 + $0x50] sm:$0xff]
        %v285 = vld [vmem:[%s237 + $0x58] sm:$0xff]
        %v286 = vld [vmem:[%s237 + $0x60] sm:$0xff]
        %v287 = vld [vmem:[%s237 + $0x68] sm:$0xff]
        %v288 = vld [vmem:[%s237 + $0x70] sm:$0xff]
        %v289 = vld [vmem:[%s237 + $0x78] sm:$0xff]
        %v290 = vld [vmem:[%s237 + $0x80] sm:$0xff]
        %v291 = vld [vmem:[%s237 + $0x88] sm:$0xff]
        %v292 = vld [vmem:[%s237 + $0x90] sm:$0xff]
        %v293 = vld [vmem:[%s237 + $0x98] sm:$0xff]
        %v294 = vld [vmem:[%s237 + $0xa0] sm:$0xff]
        %v295 = vld [vmem:[%s237 + $0xa8] sm:$0xff]
        %v296 = vld [vmem:[%s237 + $0xb0] sm:$0xff]
        %v297 = vld [vmem:[%s237 + $0xb8] sm:$0xff]
        %v298 = vld [vmem:[%s237 + $0xc0] sm:$0xff]
        %v299 = vld [vmem:[%s237 + $0xc8] sm:$0xff]
        %v300 = vld [vmem:[%s237 + $0xd0] sm:$0xff]
        %v301 = vld [vmem:[%s237 + $0xd8] sm:$0xff]
        %v302 = vld [vmem:[%s237 + $0xe0] sm:$0xff]
        %v303 = vld [vmem:[%s237 + $0xe8] sm:$0xff]
        %v304 = vld [vmem:[%s237 + $0xf0] sm:$0xff]
        %v305 = vld [vmem:[%s237 + $0xf8] sm:$0xff]
        %v306 = vld [vmem:[#allocation5] sm:$0xff]
        %v307 = vld [vmem:[#allocation5 + $0x8] sm:$0xff]
        %v308 = vld [vmem:[#allocation5 + $0x10] sm:$0xff]
        %v309 = vld [vmem:[#allocation5 + $0x18] sm:$0xff]
        %v310 = vld [vmem:[#allocation5 + $0x20] sm:$0xff]
        %v311 = vld [vmem:[#allocation5 + $0x28] sm:$0xff]
        %v312 = vld [vmem:[#allocation5 + $0x30] sm:$0xff]
        %v313 = vld [vmem:[#allocation5 + $0x38] sm:$0xff]
        %v314 = vld [vmem:[#allocation5 + $0x40] sm:$0xff]
        %v315 = vld [vmem:[#allocation5 + $0x48] sm:$0xff]
        %v316 = vld [vmem:[#allocation5 + $0x50] sm:$0xff]
        %v317 = vld [vmem:[#allocation5 + $0x58] sm:$0xff]
        %v318 = vld [vmem:[#allocation5 + $0x60] sm:$0xff]
        %v319 = vld [vmem:[#allocation5 + $0x68] sm:$0xff]
        %v320 = vld [vmem:[#allocation5 + $0x70] sm:$0xff]
        %v321 = vld [vmem:[#allocation5 + $0x78] sm:$0xff]
        %v322 = vld [vmem:[%s2] sm:$0x1]
        %v324 = vlaneseq
        %v325 = vshrl.u32 %v324, 7
        %v326 = vsub.s32 0, %v325
        %v327 = vrot.slane %v322, %v326
        %329 = vmatprep.subr.mxu0 0.0
        %330 = vmatpush1.msra.mxu0 %v306
        %331 = vmatprep.subr.mxu0 0.0
        %332 = vmatpush1.msra.mxu0 %v307
        %333 = vmatprep.subr.mxu0 0.0
        %334 = vmatpush1.msra.mxu0 %v308
        %335 = vmatprep.subr.mxu0 0.0
        %336 = vmatpush1.msra.mxu0 %v309
        %337 = vmatprep.subr.mxu0 0.0
        %338 = vmatpush1.msra.mxu0 %v310
        %339 = vmatprep.subr.mxu0 0.0
        %340 = vmatpush1.msra.mxu0 %v311
        %341 = vmatprep.subr.mxu0 0.0
        %342 = vmatpush1.msra.mxu0 %v312
        %343 = vmatprep.subr.mxu0 0.0
        %344 = vmatpush1.msra.mxu0 %v313
        %345 = vmatprep.subr.mxu0 0.0
        %346 = vmatpush1.msra.mxu0 %v314
        %347 = vmatprep.subr.mxu0 0.0
        %348 = vmatpush1.msra.mxu0 %v315
        %349 = vmatprep.subr.mxu0 0.0
        %350 = vmatpush1.msra.mxu0 %v316
        %351 = vmatprep.subr.mxu0 0.0
        %352 = vmatpush1.msra.mxu0 %v317
        %353 = vmatprep.subr.mxu0 0.0
        %354 = vmatpush1.msra.mxu0 %v318
        %355 = vmatprep.subr.mxu0 0.0
        %356 = vmatpush1.msra.mxu0 %v319
        %357 = vmatprep.subr.mxu0 0.0
        %358 = vmatpush1.msra.mxu0 %v320
        %359 = vmatprep.subr.mxu0 0.0
        %360 = vmatpush1.msra.mxu0 %v321
        %361 = vmatprep.subr.mxu0 0.0
        %362 = vmatpush1.msra.mxu0 0.0
        %363 = vmatprep.subr.mxu0 0.0
        %364 = vmatpush1.msra.mxu0 0.0
        %365 = vmatprep.subr.mxu0 0.0
        %366 = vmatpush1.msra.mxu0 0.0
        %367 = vmatprep.subr.mxu0 0.0
        %368 = vmatpush1.msra.mxu0 0.0
        %369 = vmatprep.subr.mxu0 0.0
        %370 = vmatpush1.msra.mxu0 0.0
        %371 = vmatprep.subr.mxu0 0.0
        %372 = vmatpush1.msra.mxu0 0.0
        %373 = vmatprep.subr.mxu0 0.0
        %374 = vmatpush1.msra.mxu0 0.0
        %375 = vmatprep.subr.mxu0 0.0
        %376 = vmatpush1.msra.mxu0 0.0
        %377 = vmatprep.subr.mxu0 0.0
        %378 = vmatpush1.msra.mxu0 0.0
        %379 = vmatprep.subr.mxu0 0.0
        %380 = vmatpush1.msra.mxu0 0.0
        %381 = vmatprep.subr.mxu0 0.0
        %382 = vmatpush1.msra.mxu0 0.0
        %383 = vmatprep.subr.mxu0 0.0
        %384 = vmatpush1.msra.mxu0 0.0
        %385 = vmatprep.subr.mxu0 0.0
        %386 = vmatpush1.msra.mxu0 0.0
        %387 = vmatprep.subr.mxu0 0.0
        %388 = vmatpush1.msra.mxu0 0.0
        %389 = vmatprep.subr.mxu0 0.0
        %390 = vmatpush1.msra.mxu0 0.0
        %391 = vmatprep.subr.mxu0 0.0
        %392 = vmatpush1.msra.mxu0 0.0
        %393 = vmatprep.mubr.f32.mxu0 0.0
        %394 = vmatmul.mubr.f32.gmra.mrb[0].mxu0 %v274
        %v395 = vpop.f32.mrb[0].mxu0
        %v396 = vadd.f32 %v327, %v395
        %v397 = vpop.f32.mrb[0].mxu0
        %398 = vmatprep.mubr.f32.mxu0 0.0
        %399 = vmatmul.mubr.f32.gmra.mrb[0].mxu0 %v275
        %v400 = vpop.f32.mrb[0].mxu0
        %v401 = vadd.f32 %v327, %v400
        %v402 = vpop.f32.mrb[0].mxu0
        %403 = vmatprep.mubr.f32.mxu0 0.0
        %404 = vmatmul.mubr.f32.gmra.mrb[0].mxu0 %v276
        %v405 = vpop.f32.mrb[0].mxu0
        %v406 = vadd.f32 %v327, %v405
        %v407 = vpop.f32.mrb[0].mxu0
        %408 = vmatprep.mubr.f32.mxu0 0.0
        %409 = vmatmul.mubr.f32.gmra.mrb[0].mxu0 %v277
        %v410 = vpop.f32.mrb[0].mxu0
        %v411 = vadd.f32 %v327, %v410
        %v412 = vpop.f32.mrb[0].mxu0
        %413 = vmatprep.mubr.f32.mxu0 0.0
        %414 = vmatmul.mubr.f32.gmra.mrb[0].mxu0 %v278
        %v415 = vpop.f32.mrb[0].mxu0
        %v416 = vadd.f32 %v327, %v415
        %v417 = vpop.f32.mrb[0].mxu0
        %418 = vmatprep.mubr.f32.mxu0 0.0
        %419 = vmatmul.mubr.f32.gmra.mrb[0].mxu0 %v279
        %v420 = vpop.f32.mrb[0].mxu0
        %v421 = vadd.f32 %v327, %v420
        %v422 = vpop.f32.mrb[0].mxu0
        %423 = vmatprep.mubr.f32.mxu0 0.0
        %424 = vmatmul.mubr.f32.gmra.mrb[0].mxu0 %v280
        %v425 = vpop.f32.mrb[0].mxu0
        %v426 = vadd.f32 %v327, %v425
        %v427 = vpop.f32.mrb[0].mxu0
        %428 = vmatprep.mubr.f32.mxu0 0.0
        %429 = vmatmul.mubr.f32.gmra.mrb[0].mxu0 %v281
        %v430 = vpop.f32.mrb[0].mxu0
        %v431 = vadd.f32 %v327, %v430
        %v432 = vpop.f32.mrb[0].mxu0
        %433 = vmatprep.mubr.f32.mxu0 0.0
        %434 = vmatmul.mubr.f32.gmra.mrb[0].mxu0 %v282
        %v435 = vpop.f32.mrb[0].mxu0
        %v436 = vadd.f32 %v327, %v435
        %v437 = vpop.f32.mrb[0].mxu0
        %438 = vmatprep.mubr.f32.mxu0 0.0
        %439 = vmatmul.mubr.f32.gmra.mrb[0].mxu0 %v283
        %v440 = vpop.f32.mrb[0].mxu0
        %v441 = vadd.f32 %v327, %v440
        %v442 = vpop.f32.mrb[0].mxu0
        %443 = vmatprep.mubr.f32.mxu0 0.0
        %444 = vmatmul.mubr.f32.gmra.mrb[0].mxu0 %v284
        %v445 = vpop.f32.mrb[0].mxu0
        %v446 = vadd.f32 %v327, %v445
        %v447 = vpop.f32.mrb[0].mxu0
        %448 = vmatprep.mubr.f32.mxu0 0.0
        %449 = vmatmul.mubr.f32.gmra.mrb[0].mxu0 %v285
        %v450 = vpop.f32.mrb[0].mxu0
        %v451 = vadd.f32 %v327, %v450
        %v452 = vpop.f32.mrb[0].mxu0
        %453 = vmatprep.mubr.f32.mxu0 0.0
        %454 = vmatmul.mubr.f32.gmra.mrb[0].mxu0 %v286
        %v455 = vpop.f32.mrb[0].mxu0
        %v456 = vadd.f32 %v327, %v455
        %v457 = vpop.f32.mrb[0].mxu0
        %458 = vmatprep.mubr.f32.mxu0 0.0
        %459 = vmatmul.mubr.f32.gmra.mrb[0].mxu0 %v287
        %v460 = vpop.f32.mrb[0].mxu0
        %v461 = vadd.f32 %v327, %v460
        %v462 = vpop.f32.mrb[0].mxu0
        %463 = vmatprep.mubr.f32.mxu0 0.0
        %464 = vmatmul.mubr.f32.gmra.mrb[0].mxu0 %v288
        %v465 = vpop.f32.mrb[0].mxu0
        %v466 = vadd.f32 %v327, %v465
        %v467 = vpop.f32.mrb[0].mxu0
        %468 = vmatprep.mubr.f32.mxu0 0.0
        %469 = vmatmul.mubr.f32.gmra.mrb[0].mxu0 %v289
        %v470 = vpop.f32.mrb[0].mxu0
        %v471 = vadd.f32 %v327, %v470
        %v472 = vpop.f32.mrb[0].mxu0
        %473 = vmatprep.mubr.f32.mxu0 0.0
        %474 = vmatmul.mubr.f32.gmra.mrb[0].mxu0 %v290
        %v475 = vpop.f32.mrb[0].mxu0
        %v476 = vadd.f32 %v327, %v475
        %v477 = vpop.f32.mrb[0].mxu0
        %478 = vmatprep.mubr.f32.mxu0 0.0
        %479 = vmatmul.mubr.f32.gmra.mrb[0].mxu0 %v291
        %v480 = vpop.f32.mrb[0].mxu0
        %v481 = vadd.f32 %v327, %v480
        %v482 = vpop.f32.mrb[0].mxu0
        %483 = vmatprep.mubr.f32.mxu0 0.0
        %484 = vmatmul.mubr.f32.gmra.mrb[0].mxu0 %v292
        %v485 = vpop.f32.mrb[0].mxu0
        %v486 = vadd.f32 %v327, %v485
        %v487 = vpop.f32.mrb[0].mxu0
        %488 = vmatprep.mubr.f32.mxu0 0.0
        %489 = vmatmul.mubr.f32.gmra.mrb[0].mxu0 %v293
        %v490 = vpop.f32.mrb[0].mxu0
        %v491 = vadd.f32 %v327, %v490
        %v492 = vpop.f32.mrb[0].mxu0
        %493 = vmatprep.mubr.f32.mxu0 0.0
        %494 = vmatmul.mubr.f32.gmra.mrb[0].mxu0 %v294
        %v495 = vpop.f32.mrb[0].mxu0
        %v496 = vadd.f32 %v327, %v495
        %v497 = vpop.f32.mrb[0].mxu0
        %498 = vmatprep.mubr.f32.mxu0 0.0
        %499 = vmatmul.mubr.f32.gmra.mrb[0].mxu0 %v295
        %v500 = vpop.f32.mrb[0].mxu0
        %v501 = vadd.f32 %v327, %v500
        %v502 = vpop.f32.mrb[0].mxu0
        %503 = vmatprep.mubr.f32.mxu0 0.0
        %504 = vmatmul.mubr.f32.gmra.mrb[0].mxu0 %v296
        %v505 = vpop.f32.mrb[0].mxu0
        %v506 = vadd.f32 %v327, %v505
        %v507 = vpop.f32.mrb[0].mxu0
        %508 = vmatprep.mubr.f32.mxu0 0.0
        %509 = vmatmul.mubr.f32.gmra.mrb[0].mxu0 %v297
        %v510 = vpop.f32.mrb[0].mxu0
        %v511 = vadd.f32 %v327, %v510
        %v512 = vpop.f32.mrb[0].mxu0
        %513 = vmatprep.mubr.f32.mxu0 0.0
        %514 = vmatmul.mubr.f32.gmra.mrb[0].mxu0 %v298
        %v515 = vpop.f32.mrb[0].mxu0
        %v516 = vadd.f32 %v327, %v515
        %v517 = vpop.f32.mrb[0].mxu0
        %518 = vmatprep.mubr.f32.mxu0 0.0
        %519 = vmatmul.mubr.f32.gmra.mrb[0].mxu0 %v299
        %v520 = vpop.f32.mrb[0].mxu0
        %v521 = vadd.f32 %v327, %v520
        %v522 = vpop.f32.mrb[0].mxu0
        %523 = vmatprep.mubr.f32.mxu0 0.0
        %524 = vmatmul.mubr.f32.gmra.mrb[0].mxu0 %v300
        %v525 = vpop.f32.mrb[0].mxu0
        %v526 = vadd.f32 %v327, %v525
        %v527 = vpop.f32.mrb[0].mxu0
        %528 = vmatprep.mubr.f32.mxu0 0.0
        %529 = vmatmul.mubr.f32.gmra.mrb[0].mxu0 %v301
        %v530 = vpop.f32.mrb[0].mxu0
        %v531 = vadd.f32 %v327, %v530
        %v532 = vpop.f32.mrb[0].mxu0
        %533 = vmatprep.mubr.f32.mxu0 0.0
        %534 = vmatmul.mubr.f32.gmra.mrb[0].mxu0 %v302
        %v535 = vpop.f32.mrb[0].mxu0
        %v536 = vadd.f32 %v327, %v535
        %v537 = vpop.f32.mrb[0].mxu0
        %538 = vmatprep.mubr.f32.mxu0 0.0
        %539 = vmatmul.mubr.f32.gmra.mrb[0].mxu0 %v303
        %v540 = vpop.f32.mrb[0].mxu0
        %v541 = vadd.f32 %v327, %v540
        %v542 = vpop.f32.mrb[0].mxu0
        %543 = vmatprep.mubr.f32.mxu0 0.0
        %544 = vmatmul.mubr.f32.gmra.mrb[0].mxu0 %v304
        %v545 = vpop.f32.mrb[0].mxu0
        %v546 = vadd.f32 %v327, %v545
        %v547 = vpop.f32.mrb[0].mxu0
        %548 = vmatprep.mubr.f32.mxu0 0.0
        %549 = vmatmul.mubr.f32.gmra.mrb[0].mxu0 %v305
        %v550 = vpop.f32.mrb[0].mxu0
        %v551 = vadd.f32 %v327, %v550
        %v552 = vpop.f32.mrb[0].mxu0
        %553 = vdwg.mxu0
        %v554 = vld [vmem:[#allocation7] sm:$0xff]
        %v555 = vld [vmem:[#allocation7 + $0x8] sm:$0xff]
        %v556 = vld [vmem:[#allocation7 + $0x10] sm:$0xff]
        %v557 = vld [vmem:[#allocation7 + $0x18] sm:$0xff]
        %v558 = vld [vmem:[#allocation7 + $0x20] sm:$0xff]
        %v559 = vld [vmem:[#allocation7 + $0x28] sm:$0xff]
        %v560 = vld [vmem:[#allocation7 + $0x30] sm:$0xff]
        %v561 = vld [vmem:[#allocation7 + $0x38] sm:$0xff]
        %v562 = vld [vmem:[#allocation7 + $0x40] sm:$0xff]
        %v563 = vld [vmem:[#allocation7 + $0x48] sm:$0xff]
        %v564 = vld [vmem:[#allocation7 + $0x50] sm:$0xff]
        %v565 = vld [vmem:[#allocation7 + $0x58] sm:$0xff]
        %v566 = vld [vmem:[#allocation7 + $0x60] sm:$0xff]
        %v567 = vld [vmem:[#allocation7 + $0x68] sm:$0xff]
        %v568 = vld [vmem:[#allocation7 + $0x70] sm:$0xff]
        %v569 = vld [vmem:[#allocation7 + $0x78] sm:$0xff]
        %v570 = vld [vmem:[%s4] sm:$0x1]
        %v572 = vlaneseq
        %v573 = vshrl.u32 %v572, 7
        %v574 = vsub.s32 0, %v573
        %v575 = vrot.slane %v570, %v574
        %577 = vmatprep.subr.mxu0 0.0
        %578 = vmatpush1.msra.mxu0 %v554
        %579 = vmatprep.subr.mxu0 0.0
        %580 = vmatpush1.msra.mxu0 %v555
        %581 = vmatprep.subr.mxu0 0.0
        %582 = vmatpush1.msra.mxu0 %v556
        %583 = vmatprep.subr.mxu0 0.0
        %584 = vmatpush1.msra.mxu0 %v557
        %585 = vmatprep.subr.mxu0 0.0
        %586 = vmatpush1.msra.mxu0 %v558
        %587 = vmatprep.subr.mxu0 0.0
        %588 = vmatpush1.msra.mxu0 %v559
        %589 = vmatprep.subr.mxu0 0.0
        %590 = vmatpush1.msra.mxu0 %v560
        %591 = vmatprep.subr.mxu0 0.0
        %592 = vmatpush1.msra.mxu0 %v561
        %593 = vmatprep.subr.mxu0 0.0
        %594 = vmatpush1.msra.mxu0 %v562
        %595 = vmatprep.subr.mxu0 0.0
        %596 = vmatpush1.msra.mxu0 %v563
        %597 = vmatprep.subr.mxu0 0.0
        %598 = vmatpush1.msra.mxu0 %v564
        %599 = vmatprep.subr.mxu0 0.0
        %600 = vmatpush1.msra.mxu0 %v565
        %601 = vmatprep.subr.mxu0 0.0
        %602 = vmatpush1.msra.mxu0 %v566
        %603 = vmatprep.subr.mxu0 0.0
        %604 = vmatpush1.msra.mxu0 %v567
        %605 = vmatprep.subr.mxu0 0.0
        %606 = vmatpush1.msra.mxu0 %v568
        %607 = vmatprep.subr.mxu0 0.0
        %608 = vmatpush1.msra.mxu0 %v569
        %609 = vmatprep.subr.mxu0 0.0
        %610 = vmatpush1.msra.mxu0 0.0
        %611 = vmatprep.subr.mxu0 0.0
        %612 = vmatpush1.msra.mxu0 0.0
        %613 = vmatprep.subr.mxu0 0.0
        %614 = vmatpush1.msra.mxu0 0.0
        %615 = vmatprep.subr.mxu0 0.0
        %616 = vmatpush1.msra.mxu0 0.0
        %617 = vmatprep.subr.mxu0 0.0
        %618 = vmatpush1.msra.mxu0 0.0
        %619 = vmatprep.subr.mxu0 0.0
        %620 = vmatpush1.msra.mxu0 0.0
        %621 = vmatprep.subr.mxu0 0.0
        %622 = vmatpush1.msra.mxu0 0.0
        %623 = vmatprep.subr.mxu0 0.0
        %624 = vmatpush1.msra.mxu0 0.0
        %625 = vmatprep.subr.mxu0 0.0
        %626 = vmatpush1.msra.mxu0 0.0
        %627 = vmatprep.subr.mxu0 0.0
        %628 = vmatpush1.msra.mxu0 0.0
        %629 = vmatprep.subr.mxu0 0.0
        %630 = vmatpush1.msra.mxu0 0.0
        %631 = vmatprep.subr.mxu0 0.0
        %632 = vmatpush1.msra.mxu0 0.0
        %633 = vmatprep.subr.mxu0 0.0
        %634 = vmatpush1.msra.mxu0 0.0
        %635 = vmatprep.subr.mxu0 0.0
        %636 = vmatpush1.msra.mxu0 0.0
        %637 = vmatprep.subr.mxu0 0.0
        %638 = vmatpush1.msra.mxu0 0.0
        %639 = vmatprep.subr.mxu0 0.0
        %640 = vmatpush1.msra.mxu0 0.0
        %641 = vmatprep.mubr.f32.mxu0 0.0
        %642 = vmatmul.mubr.f32.gmra.mrb[0].mxu0 %v396
        %v643 = vpop.f32.mrb[0].mxu0
        %v644 = vadd.f32 %v575, %v643
        %v645 = vpop.f32.mrb[0].mxu0
        %646 = vmatprep.mubr.f32.mxu0 0.0
        %647 = vmatmul.mubr.f32.gmra.mrb[0].mxu0 %v401
        %v648 = vpop.f32.mrb[0].mxu0
        %v649 = vadd.f32 %v575, %v648
        %v650 = vpop.f32.mrb[0].mxu0
        %651 = vmatprep.mubr.f32.mxu0 0.0
        %652 = vmatmul.mubr.f32.gmra.mrb[0].mxu0 %v406
        %v653 = vpop.f32.mrb[0].mxu0
        %v654 = vadd.f32 %v575, %v653
        %v655 = vpop.f32.mrb[0].mxu0
        %656 = vmatprep.mubr.f32.mxu0 0.0
        %657 = vmatmul.mubr.f32.gmra.mrb[0].mxu0 %v411
        %v658 = vpop.f32.mrb[0].mxu0
        %v659 = vadd.f32 %v575, %v658
        %v660 = vpop.f32.mrb[0].mxu0
        %661 = vmatprep.mubr.f32.mxu0 0.0
        %662 = vmatmul.mubr.f32.gmra.mrb[0].mxu0 %v416
        %v663 = vpop.f32.mrb[0].mxu0
        %v664 = vadd.f32 %v575, %v663
        %v665 = vpop.f32.mrb[0].mxu0
        %666 = vmatprep.mubr.f32.mxu0 0.0
        %667 = vmatmul.mubr.f32.gmra.mrb[0].mxu0 %v421
        %v668 = vpop.f32.mrb[0].mxu0
        %v669 = vadd.f32 %v575, %v668
        %v670 = vpop.f32.mrb[0].mxu0
        %671 = vmatprep.mubr.f32.mxu0 0.0
        %672 = vmatmul.mubr.f32.gmra.mrb[0].mxu0 %v426
        %v673 = vpop.f32.mrb[0].mxu0
        %v674 = vadd.f32 %v575, %v673
        %v675 = vpop.f32.mrb[0].mxu0
        %676 = vmatprep.mubr.f32.mxu0 0.0
        %677 = vmatmul.mubr.f32.gmra.mrb[0].mxu0 %v431
        %v678 = vpop.f32.mrb[0].mxu0
        %v679 = vadd.f32 %v575, %v678
        %v680 = vpop.f32.mrb[0].mxu0
        %681 = vmatprep.mubr.f32.mxu0 0.0
        %682 = vmatmul.mubr.f32.gmra.mrb[0].mxu0 %v436
        %v683 = vpop.f32.mrb[0].mxu0
        %v684 = vadd.f32 %v575, %v683
        %v685 = vpop.f32.mrb[0].mxu0
        %686 = vmatprep.mubr.f32.mxu0 0.0
        %687 = vmatmul.mubr.f32.gmra.mrb[0].mxu0 %v441
        %v688 = vpop.f32.mrb[0].mxu0
        %v689 = vadd.f32 %v575, %v688
        %v690 = vpop.f32.mrb[0].mxu0
        %691 = vmatprep.mubr.f32.mxu0 0.0
        %692 = vmatmul.mubr.f32.gmra.mrb[0].mxu0 %v446
        %v693 = vpop.f32.mrb[0].mxu0
        %v694 = vadd.f32 %v575, %v693
        %v695 = vpop.f32.mrb[0].mxu0
        %696 = vmatprep.mubr.f32.mxu0 0.0
        %697 = vmatmul.mubr.f32.gmra.mrb[0].mxu0 %v451
        %v698 = vpop.f32.mrb[0].mxu0
        %v699 = vadd.f32 %v575, %v698
        %v700 = vpop.f32.mrb[0].mxu0
        %701 = vmatprep.mubr.f32.mxu0 0.0
        %702 = vmatmul.mubr.f32.gmra.mrb[0].mxu0 %v456
        %v703 = vpop.f32.mrb[0].mxu0
        %v704 = vadd.f32 %v575, %v703
        %v705 = vpop.f32.mrb[0].mxu0
        %706 = vmatprep.mubr.f32.mxu0 0.0
        %707 = vmatmul.mubr.f32.gmra.mrb[0].mxu0 %v461
        %v708 = vpop.f32.mrb[0].mxu0
        %v709 = vadd.f32 %v575, %v708
        %v710 = vpop.f32.mrb[0].mxu0
        %711 = vmatprep.mubr.f32.mxu0 0.0
        %712 = vmatmul.mubr.f32.gmra.mrb[0].mxu0 %v466
        %v713 = vpop.f32.mrb[0].mxu0
        %v714 = vadd.f32 %v575, %v713
        %v715 = vpop.f32.mrb[0].mxu0
        %716 = vmatprep.mubr.f32.mxu0 0.0
        %717 = vmatmul.mubr.f32.gmra.mrb[0].mxu0 %v471
        %v718 = vpop.f32.mrb[0].mxu0
        %v719 = vadd.f32 %v575, %v718
        %v720 = vpop.f32.mrb[0].mxu0
        %721 = vmatprep.mubr.f32.mxu0 0.0
        %722 = vmatmul.mubr.f32.gmra.mrb[0].mxu0 %v476
        %v723 = vpop.f32.mrb[0].mxu0
        %v724 = vadd.f32 %v575, %v723
        %v725 = vpop.f32.mrb[0].mxu0
        %726 = vmatprep.mubr.f32.mxu0 0.0
        %727 = vmatmul.mubr.f32.gmra.mrb[0].mxu0 %v481
        %v728 = vpop.f32.mrb[0].mxu0
        %v729 = vadd.f32 %v575, %v728
        %v730 = vpop.f32.mrb[0].mxu0
        %731 = vmatprep.mubr.f32.mxu0 0.0
        %732 = vmatmul.mubr.f32.gmra.mrb[0].mxu0 %v486
        %v733 = vpop.f32.mrb[0].mxu0
        %v734 = vadd.f32 %v575, %v733
        %v735 = vpop.f32.mrb[0].mxu0
        %736 = vmatprep.mubr.f32.mxu0 0.0
        %737 = vmatmul.mubr.f32.gmra.mrb[0].mxu0 %v491
        %v738 = vpop.f32.mrb[0].mxu0
        %v739 = vadd.f32 %v575, %v738
        %v740 = vpop.f32.mrb[0].mxu0
        %741 = vmatprep.mubr.f32.mxu0 0.0
        %742 = vmatmul.mubr.f32.gmra.mrb[0].mxu0 %v496
        %v743 = vpop.f32.mrb[0].mxu0
        %v744 = vadd.f32 %v575, %v743
        %v745 = vpop.f32.mrb[0].mxu0
        %746 = vmatprep.mubr.f32.mxu0 0.0
        %747 = vmatmul.mubr.f32.gmra.mrb[0].mxu0 %v501
        %v748 = vpop.f32.mrb[0].mxu0
        %v749 = vadd.f32 %v575, %v748
        %v750 = vpop.f32.mrb[0].mxu0
        %751 = vmatprep.mubr.f32.mxu0 0.0
        %752 = vmatmul.mubr.f32.gmra.mrb[0].mxu0 %v506
        %v753 = vpop.f32.mrb[0].mxu0
        %v754 = vadd.f32 %v575, %v753
        %v755 = vpop.f32.mrb[0].mxu0
        %756 = vmatprep.mubr.f32.mxu0 0.0
        %757 = vmatmul.mubr.f32.gmra.mrb[0].mxu0 %v511
        %v758 = vpop.f32.mrb[0].mxu0
        %v759 = vadd.f32 %v575, %v758
        %v760 = vpop.f32.mrb[0].mxu0
        %761 = vmatprep.mubr.f32.mxu0 0.0
        %762 = vmatmul.mubr.f32.gmra.mrb[0].mxu0 %v516
        %v763 = vpop.f32.mrb[0].mxu0
        %v764 = vadd.f32 %v575, %v763
        %v765 = vpop.f32.mrb[0].mxu0
        %766 = vmatprep.mubr.f32.mxu0 0.0
        %767 = vmatmul.mubr.f32.gmra.mrb[0].mxu0 %v521
        %v768 = vpop.f32.mrb[0].mxu0
        %v769 = vadd.f32 %v575, %v768
        %v770 = vpop.f32.mrb[0].mxu0
        %771 = vmatprep.mubr.f32.mxu0 0.0
        %772 = vmatmul.mubr.f32.gmra.mrb[0].mxu0 %v526
        %v773 = vpop.f32.mrb[0].mxu0
        %v774 = vadd.f32 %v575, %v773
        %v775 = vpop.f32.mrb[0].mxu0
        %776 = vmatprep.mubr.f32.mxu0 0.0
        %777 = vmatmul.mubr.f32.gmra.mrb[0].mxu0 %v531
        %v778 = vpop.f32.mrb[0].mxu0
        %v779 = vadd.f32 %v575, %v778
        %v780 = vpop.f32.mrb[0].mxu0
        %781 = vmatprep.mubr.f32.mxu0 0.0
        %782 = vmatmul.mubr.f32.gmra.mrb[0].mxu0 %v536
        %v783 = vpop.f32.mrb[0].mxu0
        %v784 = vadd.f32 %v575, %v783
        %v785 = vpop.f32.mrb[0].mxu0
        %786 = vmatprep.mubr.f32.mxu0 0.0
        %787 = vmatmul.mubr.f32.gmra.mrb[0].mxu0 %v541
        %v788 = vpop.f32.mrb[0].mxu0
        %v789 = vadd.f32 %v575, %v788
        %v790 = vpop.f32.mrb[0].mxu0
        %791 = vmatprep.mubr.f32.mxu0 0.0
        %792 = vmatmul.mubr.f32.gmra.mrb[0].mxu0 %v546
        %v793 = vpop.f32.mrb[0].mxu0
        %v794 = vadd.f32 %v575, %v793
        %v795 = vpop.f32.mrb[0].mxu0
        %796 = vmatprep.mubr.f32.mxu0 0.0
        %797 = vmatmul.mubr.f32.gmra.mrb[0].mxu0 %v551
        %v798 = vpop.f32.mrb[0].mxu0
        %v799 = vadd.f32 %v575, %v798
        %v800 = vpop.f32.mrb[0].mxu0
        %801 = vdwg.mxu0
        %v802 = vadd.f32 %v644, %v274
        %v803 = vadd.f32 %v649, %v275
        %v804 = vadd.f32 %v654, %v276
        %v805 = vadd.f32 %v659, %v277
        %v806 = vadd.f32 %v664, %v278
        %v807 = vadd.f32 %v669, %v279
        %v808 = vadd.f32 %v674, %v280
        %v809 = vadd.f32 %v679, %v281
        %v810 = vadd.f32 %v684, %v282
        %v811 = vadd.f32 %v689, %v283
        %v812 = vadd.f32 %v694, %v284
        %v813 = vadd.f32 %v699, %v285
        %v814 = vadd.f32 %v704, %v286
        %v815 = vadd.f32 %v709, %v287
        %v816 = vadd.f32 %v714, %v288
        %v817 = vadd.f32 %v719, %v289
        %v818 = vadd.f32 %v724, %v290
        %v819 = vadd.f32 %v729, %v291
        %v820 = vadd.f32 %v734, %v292
        %v821 = vadd.f32 %v739, %v293
        %v822 = vadd.f32 %v744, %v294
        %v823 = vadd.f32 %v749, %v295
        %v824 = vadd.f32 %v754, %v296
        %v825 = vadd.f32 %v759, %v297
        %v826 = vadd.f32 %v764, %v298
        %v827 = vadd.f32 %v769, %v299
        %v828 = vadd.f32 %v774, %v300
        %v829 = vadd.f32 %v779, %v301
        %v830 = vadd.f32 %v784, %v302
        %v831 = vadd.f32 %v789, %v303
        %v832 = vadd.f32 %v794, %v304
        %v833 = vadd.f32 %v799, %v305
        %v834 = vmax.f32 %v802, 0.0
        %v835 = vmax.f32 %v803, 0.0
        %v836 = vmax.f32 %v804, 0.0
        %v837 = vmax.f32 %v805, 0.0
        %v838 = vmax.f32 %v806, 0.0
        %v839 = vmax.f32 %v807, 0.0
        %v840 = vmax.f32 %v808, 0.0
        %v841 = vmax.f32 %v809, 0.0
        %v842 = vmax.f32 %v810, 0.0
        %v843 = vmax.f32 %v811, 0.0
        %v844 = vmax.f32 %v812, 0.0
        %v845 = vmax.f32 %v813, 0.0
        %v846 = vmax.f32 %v814, 0.0
        %v847 = vmax.f32 %v815, 0.0
        %v848 = vmax.f32 %v816, 0.0
        %v849 = vmax.f32 %v817, 0.0
        %v850 = vmax.f32 %v818, 0.0
        %v851 = vmax.f32 %v819, 0.0
        %v852 = vmax.f32 %v820, 0.0
        %v853 = vmax.f32 %v821, 0.0
        %v854 = vmax.f32 %v822, 0.0
        %v855 = vmax.f32 %v823, 0.0
        %v856 = vmax.f32 %v824, 0.0
        %v857 = vmax.f32 %v825, 0.0
        %v858 = vmax.f32 %v826, 0.0
        %v859 = vmax.f32 %v827, 0.0
        %v860 = vmax.f32 %v828, 0.0
        %v861 = vmax.f32 %v829, 0.0
        %v862 = vmax.f32 %v830, 0.0
        %v863 = vmax.f32 %v831, 0.0
        %v864 = vmax.f32 %v832, 0.0
        %v865 = vmax.f32 %v833, 0.0
        %866 = vst [vmem:[%s271] sm:$0xff] %v834
        %867 = vst [vmem:[%s271 + $0x8] sm:$0xff] %v835
        %868 = vst [vmem:[%s271 + $0x10] sm:$0xff] %v836
        %869 = vst [vmem:[%s271 + $0x18] sm:$0xff] %v837
        %870 = vst [vmem:[%s271 + $0x20] sm:$0xff] %v838
        %871 = vst [vmem:[%s271 + $0x28] sm:$0xff] %v839
        %872 = vst [vmem:[%s271 + $0x30] sm:$0xff] %v840
        %873 = vst [vmem:[%s271 + $0x38] sm:$0xff] %v841
        %874 = vst [vmem:[%s271 + $0x40] sm:$0xff] %v842
        %875 = vst [vmem:[%s271 + $0x48] sm:$0xff] %v843
        %876 = vst [vmem:[%s271 + $0x50] sm:$0xff] %v844
        %877 = vst [vmem:[%s271 + $0x58] sm:$0xff] %v845
        %878 = vst [vmem:[%s271 + $0x60] sm:$0xff] %v846
        %879 = vst [vmem:[%s271 + $0x68] sm:$0xff] %v847
        %880 = vst [vmem:[%s271 + $0x70] sm:$0xff] %v848
        %881 = vst [vmem:[%s271 + $0x78] sm:$0xff] %v849
        %882 = vst [vmem:[%s271 + $0x80] sm:$0xff] %v850
        %883 = vst [vmem:[%s271 + $0x88] sm:$0xff] %v851
        %884 = vst [vmem:[%s271 + $0x90] sm:$0xff] %v852
        %885 = vst [vmem:[%s271 + $0x98] sm:$0xff] %v853
        %886 = vst [vmem:[%s271 + $0xa0] sm:$0xff] %v854
        %887 = vst [vmem:[%s271 + $0xa8] sm:$0xff] %v855
        %888 = vst [vmem:[%s271 + $0xb0] sm:$0xff] %v856
        %889 = vst [vmem:[%s271 + $0xb8] sm:$0xff] %v857
        %890 = vst [vmem:[%s271 + $0xc0] sm:$0xff] %v858
        %891 = vst [vmem:[%s271 + $0xc8] sm:$0xff] %v859
        %892 = vst [vmem:[%s271 + $0xd0] sm:$0xff] %v860
        %893 = vst [vmem:[%s271 + $0xd8] sm:$0xff] %v861
        %894 = vst [vmem:[%s271 + $0xe0] sm:$0xff] %v862
        %895 = vst [vmem:[%s271 + $0xe8] sm:$0xff] %v863
        %896 = vst [vmem:[%s271 + $0xf0] sm:$0xff] %v864
        %897 = vst [vmem:[%s271 + $0xf8] sm:$0xff] %v865
        %s898 = sand.u32 %s141, 1
        %s899 = scalar_lea.sflag [#allocation4], %s898
        %s900 = sand.u32 %s141, 1
        %s901 = smul.addr %s900, 256
        %s902 = scalar_lea.vmem [#allocation8], %s901
        // Predicated region
        $region53: #{tpu_custom_call.1} parent=39 // pred_check
          %p903 = pneg %p151
        $region54: #{tpu_custom_call.1} parent=39 // pred_check_branch
          %905 = sbr.rel (%p903) target = $region56
        $region55: #{tpu_custom_call.1} parent=39 // pred_region
          %s906 = smul.u32 32, %s23
          %s908 = ssub.s32 4096, 4096
          %909 = vsyncadd %s899, %s908
          %s910 = smul.addr %s906, 128
          %s911 = scalar_lea.hbm %s5, %s910
          %s912 = sshll.u32 %s902, 4
          %s913 = int_to_ptr.vmem [resolvable:$true] %s912
          %918 = dma.vmem_to_hbm [thread:$0]  %s913, 4096, %s911, %s899, 128, 128, 8
        $region56: #{tpu_custom_call.1} parent=39 // pred_fallthru
          _
      $region40: #{tpu_custom_call.1} parent=5 // pred_fallthru
        _
      %p919 = scmp.le.s32.totalorder 2, %s18
      // Predicated region
      $region57: #{tpu_custom_call.1} parent=5 // pred_check
        %p920 = pneg %p919
      $region58: #{tpu_custom_call.1} parent=5 // pred_check_branch
        %922 = sbr.rel (%p920) target = $region60
      $region59: #{tpu_custom_call.1} parent=5 // pred_region
        %s923 = ssub.s32 %s18, 2
        // Predicated region
        $region61: #{tpu_custom_call.1} parent=59 // pred_check
          %p924 = pneg %p157
        $region62: #{tpu_custom_call.1} parent=59 // pred_check_branch
          %926 = sbr.rel (%p924) target = $region64
        $region63: #{tpu_custom_call.1} parent=59 // pred_region
          %s927 = sand.u32 %s142, 1
          %s928 = scalar_lea.sflag [#allocation4], %s927
          %s929 = sand.u32 %s142, 1
          %s930 = smul.addr %s929, 256
          %s931 = scalar_lea.vmem [#allocation8], %s930
          %932 = dma.done %s928, 4096
        $region64: #{tpu_custom_call.1} parent=59 // pred_fallthru
          _
      $region60: #{tpu_custom_call.1} parent=5 // pred_fallthru
        _
    $region6: #{tpu_custom_call.1} parent=1 // loop_footer
      %s22 = sadd.s32 1, %s18
    $region7: #{tpu_custom_call.1} parent=1 // loop_footer_branch
      %17 = sbr.rel target = $region3
    $region8: #{tpu_custom_call.1} parent=1 // loop_exit
      _
    %933 = vsyncpa [#allocation3], 1
    %s934 = scalar_lea.sflag [#allocation3], 1
    %935 = vsyncpa %s934, 1
    %936 = vsyncpa [#allocation6], 1
    %937 = vsyncpa [#allocation4], 1
    %s938 = scalar_lea.sflag [#allocation4], 1
    %939 = vsyncpa %s938, 1

</llo_original>
